<compile_context>
chip_gen: v6e
topology: v6e:2x2x1
jax: 0.10.0
libtpu: 0.0.40
codegen_flags: <defaults>
</compile_context>

<pallas_src>
import functools

import jax
import jax.numpy as jnp
from jax import lax
from jax.experimental import pallas as pl
from jax.experimental.pallas import tpu as pltpu

_SUBLANE = 8


def _round_up(x, m):
    return (x + m - 1) // m * m


@functools.lru_cache(maxsize=1)
def _vmem_capacity_bytes():
    """Physical VMEM per TensorCore; conservative (v7x) fallback if unknown."""
    try:
        info = pltpu.get_tpu_info()
        for attr in ("vmem_capacity_bytes", "vmem_bytes", "vmem_size_bytes"):
            v = getattr(info, attr, None)
            if v:
                return int(v)
    except Exception:
        pass
    return 64 * 1024 * 1024  # v7x per-TC VMEM (safe lower bound across gens)


def _per_row_vmem_bytes(nin, io_itemsize):
    # double-buffered x tile + double-buffered out tile + f32 intermediates (h, y, slack)
    return (2 * io_itemsize + 2 * io_itemsize + 3 * 4) * nin


def _choose_tile_b(B, per_row, resident_bytes, vmem_budget):
    """Largest batch tile that fits the VMEM budget, with megacore-friendly cap."""
    if B <= _SUBLANE:
        # Single block spanning the whole (tiny) batch; full-dim block is always legal.
        return max(B, 1)
    tile = _SUBLANE
    for cand in (8192, 4096, 2048, 1024, 512, 256, 128, 64, 32, 16, 8):
        if resident_bytes + cand * per_row <= vmem_budget:
            tile = cand
            break
    tile = min(tile, _round_up(B, _SUBLANE))
    # v7x has 2 TensorCores: keep >= 2 grid steps so the "parallel" batch axis
    # can be sharded across both cores (harmless on single-TC v5e/v6e).
    two_step = max(_SUBLANE, _round_up(pl.cdiv(B, 2), _SUBLANE))
    return min(tile, two_step)


def _trajsimi_kernel(x_ref, w1_ref, b1_ref, w2_ref, b2_ref, o_ref):
    # x: [tile_b, nin]; w1/w2: [nin, nin] in (in, out) layout; b1/b2: [1, nin] f32.
    x = x_ref[...]

    # Linear 1 + ReLU (f32 accumulation on the MXU).
    h = jnp.dot(x, w1_ref[...], preferred_element_type=jnp.float32) + b1_ref[...]
    h = jnp.maximum(h, 0.0).astype(w2_ref.dtype)

    # Linear 2.
    y = jnp.dot(h, w2_ref[...], preferred_element_type=jnp.float32) + b2_ref[...]

    # F.normalize(y, p=2, dim=1, eps=1e-12):
    #   y / max(||y||, 1e-12)  ==  y * rsqrt(max(sum(y*y), 1e-24))
    ss = jnp.sum(y * y, axis=1, keepdims=True)
    o_ref[...] = (y * lax.rsqrt(jnp.maximum(ss, 1e-24))).astype(o_ref.dtype)


def prepare_trajsimi_params(w1, b1, w2, b2, param_dtype=None):
    """One-time preprocessing of torch-style Linear params.

    w1, w2: (out, in) torch layout; b1, b2: (nin,).
    Returns (in, out)-layout weights and (1, nin) f32 biases.  Call ONCE and
    reuse across forwards so the transpose is not re-materialized per call.
    Optionally cast weights to bf16 (param_dtype=jnp.bfloat16) on v6e/v7x;
    MXU accumulation stays f32 either way.
    """
    w1_t = jnp.asarray(w1).T
    w2_t = jnp.asarray(w2).T
    if param_dtype is not None:
        w1_t = w1_t.astype(param_dtype)
        w2_t = w2_t.astype(param_dtype)
    b1_r = jnp.asarray(b1, jnp.float32).reshape(1, -1)
    b2_r = jnp.asarray(b2, jnp.float32).reshape(1, -1)
    return w1_t, b1_r, w2_t, b2_r


@jax.jit
def trajsimi_regression(trajs, w1_t, b1_r, w2_t, b2_r):
    """trajs: [B, nin]; w1_t/w2_t: [nin, nin] (in, out) layout; b*_r: [1, nin] f32."""
    B, nin = trajs.shape
    io_itemsize = jnp.dtype(trajs.dtype).itemsize
    w_itemsize = jnp.dtype(w1_t.dtype).itemsize

    # Pallas double-buffers every input spec by default, including the
    # grid-invariant weights/biases, so count them twice.
    resident_bytes = 2 * (2 * nin * nin * w_itemsize + 2 * nin * 4)

    vmem_cap = _vmem_capacity_bytes()
    vmem_budget = vmem_cap * 3 // 4  # headroom for Mosaic internal scratch

    per_row = _per_row_vmem_bytes(nin, io_itemsize)
    tile_b = _choose_tile_b(B, per_row, resident_bytes, vmem_budget)
    grid_b = pl.cdiv(B, tile_b)

    # TODO(synk): when resident_bytes alone exceeds vmem_budget (huge nin),
    # switch to a K-tiled weight-streaming grid instead of hoping it fits.
    footprint = resident_bytes + tile_b * per_row
    vmem_limit = max(32 * 1024 * 1024, footprint + 8 * 1024 * 1024)
    vmem_limit = min(vmem_limit, vmem_cap)

    # Rows are independent (per-row matmul + per-row normalize), so a partial
    # last batch block is safe: garbage rows stay in their own rows and their
    # out-of-range output writes are discarded.
    out = pl.pallas_call(
        _trajsimi_kernel,
        out_shape=jax.ShapeDtypeStruct((B, nin), trajs.dtype),
        grid=(grid_b,),
        in_specs=[
            pl.BlockSpec((tile_b, nin), lambda i: (i, 0)),  # x: tiled over batch
            pl.BlockSpec((nin, nin), lambda i: (0, 0)),     # w1: VMEM-resident
            pl.BlockSpec((1, nin), lambda i: (0, 0)),       # b1
            pl.BlockSpec((nin, nin), lambda i: (0, 0)),     # w2
            pl.BlockSpec((1, nin), lambda i: (0, 0)),       # b2
        ],
        out_specs=pl.BlockSpec((tile_b, nin), lambda i: (i, 0)),
        compiler_params=pltpu.CompilerParams(
            dimension_semantics=("parallel",),
            vmem_limit_bytes=int(vmem_limit),
        ),
    )(trajs, w1_t, b1_r, w2_t, b2_r)
    return out


def reference(trajs, w1, b1, w2, b2):
    h = jnp.maximum(trajs @ w1.T + b1, 0.0)
    y = h @ w2.T + b2
    norm = jnp.sqrt(jnp.sum(y * y, axis=1, keepdims=True))
    return y / jnp.maximum(norm, 1e-12)


if __name__ == "__main__":
    key = jax.random.PRNGKey(0)
    B, nin = 8, 32

    k_x, k_w1, k_b1, k_w2, k_b2 = jax.random.split(key, 5)
    bound = 1.0 / (nin ** 0.5)  # torch.nn.Linear-style uniform init
    trajs = jax.random.normal(k_x, (B, nin), dtype=jnp.float32)
    w1 = jax.random.uniform(k_w1, (nin, nin), minval=-bound, maxval=bound, dtype=jnp.float32)
    b1 = jax.random.uniform(k_b1, (nin,), minval=-bound, maxval=bound, dtype=jnp.float32)
    w2 = jax.random.uniform(k_w2, (nin, nin), minval=-bound, maxval=bound, dtype=jnp.float32)
    b2 = jax.random.uniform(k_b2, (nin,), minval=-bound, maxval=bound, dtype=jnp.float32)

    params = prepare_trajsimi_params(w1, b1, w2, b2)  # one-time (in,out) layout prep
    out = trajsimi_regression(trajs, *params)
    out = jax.block_until_ready(out)

    ref = reference(trajs, w1, b1, w2, b2)
    assert out.shape == (B, nin)
    assert jnp.allclose(out, ref, atol=3e-5, rtol=3e-5), "mismatch vs reference"

    print("KERNEL_OK")
</pallas_src>

<mosaic_0001>
module attributes {stable_mosaic.version = 11 : i64} {
  func.func @_trajsimi_kernel(%arg0: i32, %arg1: memref<8x32xf32, #tpu.memory_space<vmem>>, %arg2: memref<32x32xf32, #tpu.memory_space<vmem>>, %arg3: memref<1x32xf32, #tpu.memory_space<vmem>>, %arg4: memref<32x32xf32, #tpu.memory_space<vmem>>, %arg5: memref<1x32xf32, #tpu.memory_space<vmem>>, %arg6: memref<8x32xf32, #tpu.memory_space<vmem>>) attributes {dimension_semantics = [#tpu.dimension_semantics<parallel>], iteration_bounds = array<i64: 1>, scalar_prefetch = 0 : i64, scratch_operands = 0 : i64, tpu.core_type = #tpu.core_type<tc>, window_params = [{transform_indices = @transform_0, window_bounds = array<i64: 8, 32>}, {pipeline_mode = #tpu.pipeline_mode<synchronous>, transform_indices = @transform_1, window_bounds = array<i64: 32, 32>}, {pipeline_mode = #tpu.pipeline_mode<synchronous>, transform_indices = @transform_2, window_bounds = array<i64: 1, 32>}, {pipeline_mode = #tpu.pipeline_mode<synchronous>, transform_indices = @transform_3, window_bounds = array<i64: 32, 32>}, {pipeline_mode = #tpu.pipeline_mode<synchronous>, transform_indices = @transform_4, window_bounds = array<i64: 1, 32>}, {transform_indices = @transform_5, window_bounds = array<i64: 8, 32>}]} {
    %c0 = arith.constant 0 : index
    %c0_0 = arith.constant 0 : index
    %0 = vector.load %arg1[%c0, %c0_0] : memref<8x32xf32, #tpu.memory_space<vmem>>, vector<8x32xf32>
    %c0_1 = arith.constant 0 : index
    %c0_2 = arith.constant 0 : index
    %1 = vector.load %arg2[%c0_1, %c0_2] : memref<32x32xf32, #tpu.memory_space<vmem>>, vector<32x32xf32>
    %cst = arith.constant dense<0.000000e+00> : vector<8x32xf32>
    %2 = tpu.matmul %0, %1, %cst {dimension_numbers = #tpu.dot_dimension_numbers<[1], [0], [0], [1], [0, 0, 1, 1], [], []>} : vector<8x32xf32>, vector<32x32xf32>, vector<8x32xf32> -> vector<8x32xf32>
    %c0_3 = arith.constant 0 : index
    %c0_4 = arith.constant 0 : index
    %3 = vector.load %arg3[%c0_3, %c0_4] : memref<1x32xf32, #tpu.memory_space<vmem>>, vector<1x32xf32>
    %4 = vector.broadcast %3 : vector<1x32xf32> to vector<8x32xf32>
    %5 = arith.addf %2, %4 : vector<8x32xf32>
    %cst_5 = arith.constant 0.000000e+00 : f32
    %6 = vector.broadcast %cst_5 : f32 to vector<8x32xf32>
    %7 = arith.maximumf %5, %6 : vector<8x32xf32>
    %c0_6 = arith.constant 0 : index
    %c0_7 = arith.constant 0 : index
    %8 = vector.load %arg4[%c0_6, %c0_7] : memref<32x32xf32, #tpu.memory_space<vmem>>, vector<32x32xf32>
    %cst_8 = arith.constant dense<0.000000e+00> : vector<8x32xf32>
    %9 = tpu.matmul %7, %8, %cst_8 {dimension_numbers = #tpu.dot_dimension_numbers<[1], [0], [0], [1], [0, 0, 1, 1], [], []>} : vector<8x32xf32>, vector<32x32xf32>, vector<8x32xf32> -> vector<8x32xf32>
    %c0_9 = arith.constant 0 : index
    %c0_10 = arith.constant 0 : index
    %10 = vector.load %arg5[%c0_9, %c0_10] : memref<1x32xf32, #tpu.memory_space<vmem>>, vector<1x32xf32>
    %11 = vector.broadcast %10 : vector<1x32xf32> to vector<8x32xf32>
    %12 = arith.addf %9, %11 : vector<8x32xf32>
    %13 = arith.mulf %12, %12 : vector<8x32xf32>
    %cst_11 = arith.constant dense<0.000000e+00> : vector<8xf32>
    %14 = vector.multi_reduction <add>, %13, %cst_11 [1] : vector<8x32xf32> to vector<8xf32>
    %15 = vector.shape_cast %14 : vector<8xf32> to vector<8x1xf32>
    %cst_12 = arith.constant 1.000000e-24 : f32
    %16 = vector.broadcast %cst_12 : f32 to vector<8x1xf32>
    %17 = arith.maximumf %15, %16 : vector<8x1xf32>
    %18 = math.rsqrt %17 : vector<8x1xf32>
    %19 = vector.broadcast %18 : vector<8x1xf32> to vector<8x32xf32>
    %20 = arith.mulf %12, %19 : vector<8x32xf32>
    %c0_13 = arith.constant 0 : index
    %c0_14 = arith.constant 0 : index
    %21 = vector.load %arg6[%c0_13, %c0_14] : memref<8x32xf32, #tpu.memory_space<vmem>>, vector<8x32xf32>
    tpu.vector_store %arg6[%c0_13, %c0_14], %20 {strides = array<i32>} : memref<8x32xf32, #tpu.memory_space<vmem>>, vector<8x32xf32>,
    return
  }
  func.func @transform_0(%arg0: i32) -> (i32, i32) {
    %c0_i32 = arith.constant 0 : i32
    %c0_i32_0 = arith.constant 0 : i32
    return %arg0, %c0_i32 : i32, i32
  }
  func.func @transform_1(%arg0: i32) -> (i32, i32) {
    %c0_i32 = arith.constant 0 : i32
    %c0_i32_0 = arith.constant 0 : i32
    %c0_i32_1 = arith.constant 0 : i32
    return %c0_i32, %c0_i32_0 : i32, i32
  }
  func.func @transform_2(%arg0: i32) -> (i32, i32) {
    %c0_i32 = arith.constant 0 : i32
    %c0_i32_0 = arith.constant 0 : i32
    %c0_i32_1 = arith.constant 0 : i32
    return %c0_i32, %c0_i32_0 : i32, i32
  }
  func.func @transform_3(%arg0: i32) -> (i32, i32) {
    %c0_i32 = arith.constant 0 : i32
    %c0_i32_0 = arith.constant 0 : i32
    %c0_i32_1 = arith.constant 0 : i32
    return %c0_i32, %c0_i32_0 : i32, i32
  }
  func.func @transform_4(%arg0: i32) -> (i32, i32) {
    %c0_i32 = arith.constant 0 : i32
    %c0_i32_0 = arith.constant 0 : i32
    %c0_i32_1 = arith.constant 0 : i32
    return %c0_i32, %c0_i32_0 : i32, i32
  }
  func.func @transform_5(%arg0: i32) -> (i32, i32) {
    %c0_i32 = arith.constant 0 : i32
    %c0_i32_0 = arith.constant 0 : i32
    return %arg0, %c0_i32 : i32, i32
  }
}

</mosaic_0001>

<llo_original>
// kernel: trajsimi_regression.1
$region0: #{trajsimi_regression.1}
  #allocation0 [shape = 'u32[]', space=smem, size = 0x4, offset = 0x4, fixed_abs, tag = 'smem constant byte address 0x4 - core index']
  #allocation1 [shape = 'u32[144,128]{1,0:T(1,128)}', space=vmem, size = 0x12000, scoped, tag = 'internal scratch']
  %s0 = inlined_call_operand.hbm [shape: f32[8,32], index: 0, kind: input, shape index: {}]
  %s1 = inlined_call_operand.hbm [shape: f32[32,32], index: 1, kind: input, shape index: {}]
  %s2 = inlined_call_operand.vmem [shape: f32[1,32], index: 2, kind: input, shape index: {}]
  %s3 = inlined_call_operand.hbm [shape: f32[32,32], index: 3, kind: input, shape index: {}]
  %s4 = inlined_call_operand.vmem [shape: f32[1,32], index: 4, kind: input, shape index: {}]
  %s5 = inlined_call_operand.hbm [shape: f32[8,32], index: 5, kind: output, shape index: {}]
  %s6 = sld [smem:[#allocation0]]
  $region42: #{trajsimi_regression.1} parent=0
    _
  %s8 = ssub.s32 1, %s6
  %s9 = scalar_select 0, %s8, %s6
  $region1: #{trajsimi_regression.1} parent=0
    #allocation2 [shape = 'u8[4096]{0}', space=vmem, size = 0x1000, scoped, tag = 'input window, operand 0, single buffered']
    #allocation3 [shape = 's32[1]{0}', space=sflag, size = 0x4, scoped, tag = 'scoped memory for trajsimi_regression.1']
    #allocation4 [shape = 's32[1]{0}', space=sflag, size = 0x4, scoped, tag = 'scoped memory for trajsimi_regression.1']
    #allocation5 [shape = 'u8[16384]{0}', space=vmem, size = 0x4000, scoped, tag = 'input window, operand 1, single buffered']
    #allocation6 [shape = 's32[1]{0}', space=sflag, size = 0x4, scoped, tag = 'scoped memory for trajsimi_regression.1']
    #allocation7 [shape = 'u8[16384]{0}', space=vmem, size = 0x4000, scoped, tag = 'input window, operand 3, single buffered']
    #allocation8 [shape = 'u8[4096]{0}', space=vmem, size = 0x1000, scoped, tag = 'output window, operand 0, single buffered']
    %10 = vsyncpa [#allocation3], 0
    %11 = vsyncpa [#allocation6], 0
    %12 = vsyncpa [#allocation4], 0
    // Predicated region
    $region2: #{trajsimi_regression.1} parent=1 // pred_check
      _
    $region3: #{trajsimi_regression.1} parent=1 // pred_check_branch
      %14 = sbr.rel (0) target = $region5
    $region4: #{trajsimi_regression.1} parent=1 // pred_region
      %s16 = ssub.s32 128, 128
      %17 = vsyncadd [#allocation3], %s16
      %s19 = sshll.u32 [#allocation2], 4
      %s20 = int_to_ptr.vmem [resolvable:$true] %s19
      %22 = dma.hbm_to_vmem [thread:$0]  %s0, 128, %s20, [#allocation3]
    $region5: #{trajsimi_regression.1} parent=1 // pred_fallthru
      _
    // Predicated region
    $region6: #{trajsimi_regression.1} parent=1 // pred_check
      _
    $region7: #{trajsimi_regression.1} parent=1 // pred_check_branch
      %24 = sbr.rel (0) target = $region9
    $region8: #{trajsimi_regression.1} parent=1 // pred_region
      %s26 = ssub.s32 512, 512
      %27 = vsyncadd [#allocation6], %s26
      %s28 = sshll.u32 [#allocation5], 4
      %s29 = int_to_ptr.vmem [resolvable:$true] %s28
      %34 = dma.hbm_to_vmem [thread:$0]  %s1, 512, %s29, [#allocation6], 128, 128, 8
    $region9: #{trajsimi_regression.1} parent=1 // pred_fallthru
      _
    // Predicated region
    $region10: #{trajsimi_regression.1} parent=1 // pred_check
      _
    $region11: #{trajsimi_regression.1} parent=1 // pred_check_branch
      %36 = sbr.rel (0) target = $region13
    $region12: #{trajsimi_regression.1} parent=1 // pred_region
      _
    $region13: #{trajsimi_regression.1} parent=1 // pred_fallthru
      _
    // Predicated region
    $region14: #{trajsimi_regression.1} parent=1 // pred_check
      _
    $region15: #{trajsimi_regression.1} parent=1 // pred_check_branch
      %38 = sbr.rel (0) target = $region17
    $region16: #{trajsimi_regression.1} parent=1 // pred_region
      %s40 = ssub.s32 512, 512
      %41 = vsyncadd [#allocation6], %s40
      %s42 = sshll.u32 [#allocation7], 4
      %s43 = int_to_ptr.vmem [resolvable:$true] %s42
      %48 = dma.hbm_to_vmem [thread:$0]  %s3, 512, %s43, [#allocation6], 128, 128, 8
    $region17: #{trajsimi_regression.1} parent=1 // pred_fallthru
      _
    // Predicated region
    $region18: #{trajsimi_regression.1} parent=1 // pred_check
      _
    $region19: #{trajsimi_regression.1} parent=1 // pred_check_branch
      %50 = sbr.rel (0) target = $region21
    $region20: #{trajsimi_regression.1} parent=1 // pred_region
      _
    $region21: #{trajsimi_regression.1} parent=1 // pred_fallthru
      _
    // Predicated region
    $region22: #{trajsimi_regression.1} parent=1 // pred_check
      _
    $region23: #{trajsimi_regression.1} parent=1 // pred_check_branch
      %52 = sbr.rel (0) target = $region25
    $region24: #{trajsimi_regression.1} parent=1 // pred_region
      %53 = dma.done [#allocation3], 128
    $region25: #{trajsimi_regression.1} parent=1 // pred_fallthru
      _
    // Predicated region
    $region26: #{trajsimi_regression.1} parent=1 // pred_check
      _
    $region27: #{trajsimi_regression.1} parent=1 // pred_check_branch
      %55 = sbr.rel (0) target = $region29
    $region28: #{trajsimi_regression.1} parent=1 // pred_region
      %56 = dma.done [#allocation6], 512
    $region29: #{trajsimi_regression.1} parent=1 // pred_fallthru
      _
    // Predicated region
    $region30: #{trajsimi_regression.1} parent=1 // pred_check
      _
    $region31: #{trajsimi_regression.1} parent=1 // pred_check_branch
      %58 = sbr.rel (0) target = $region33
    $region32: #{trajsimi_regression.1} parent=1 // pred_region
      %59 = dma.done [#allocation6], 512
    $region33: #{trajsimi_regression.1} parent=1 // pred_fallthru
      _
    %v60 = vld [vmem:[#allocation2] sm:$0xff]
    %v61 = vld [vmem:[#allocation5] sm:$0xff]
    %v62 = vld [vmem:[#allocation5 + $0x8] sm:$0xff]
    %v63 = vld [vmem:[#allocation5 + $0x10] sm:$0xff]
    %v64 = vld [vmem:[#allocation5 + $0x18] sm:$0xff]
    %v65 = vld [vmem:[%s2] sm:$0x1]
    %v67 = vlaneseq
    %v68 = vshrl.u32 %v67, 7
    %v69 = vsub.s32 0, %v68
    %v70 = vrot.slane %v65, %v69
    %vm72 = vcmask 261120
    %v74 = vsel %vm72, %v60, 0
    %76 = vmatprep.subr.mxu0 0.0
    %77 = vmatpush1.msra.mxu0 0.0
    %78 = vmatprep.subr.mxu0 0.0
    %79 = vmatpush1.msra.mxu0 0.0
    %80 = vmatprep.subr.mxu0 0.0
    %81 = vmatpush1.msra.mxu0 0.0
    %82 = vmatprep.subr.mxu0 0.0
    %83 = vmatpush1.msra.mxu0 0.0
    %84 = vmatprep.subr.mxu0 0.0
    %85 = vmatpush1.msra.mxu0 0.0
    %86 = vmatprep.subr.mxu0 0.0
    %87 = vmatpush1.msra.mxu0 0.0
    %88 = vmatprep.subr.mxu0 0.0
    %89 = vmatpush1.msra.mxu0 0.0
    %90 = vmatprep.subr.mxu0 0.0
    %91 = vmatpush1.msra.mxu0 0.0
    %92 = vmatprep.subr.mxu0 0.0
    %93 = vmatpush1.msra.mxu0 0.0
    %94 = vmatprep.subr.mxu0 0.0
    %95 = vmatpush1.msra.mxu0 0.0
    %96 = vmatprep.subr.mxu0 0.0
    %97 = vmatpush1.msra.mxu0 0.0
    %98 = vmatprep.subr.mxu0 0.0
    %99 = vmatpush1.msra.mxu0 0.0
    %100 = vmatprep.subr.mxu0 0.0
    %101 = vmatpush1.msra.mxu0 %v64
    %102 = vmatprep.subr.mxu0 0.0
    %103 = vmatpush1.msra.mxu0 %v63
    %104 = vmatprep.subr.mxu0 0.0
    %105 = vmatpush1.msra.mxu0 %v62
    %106 = vmatprep.subr.mxu0 0.0
    %107 = vmatpush1.msra.mxu0 %v61
    %108 = vmatprep.subr.mxu0 0.0
    %109 = vmatpush2.msra.mxu0 0.0
    %110 = vmatprep.subr.mxu0 0.0
    %111 = vmatpush2.msra.mxu0 0.0
    %112 = vmatprep.subr.mxu0 0.0
    %113 = vmatpush2.msra.mxu0 0.0
    %114 = vmatprep.subr.mxu0 0.0
    %115 = vmatpush2.msra.mxu0 0.0
    %116 = vmatprep.subr.mxu0 0.0
    %117 = vmatpush2.msra.mxu0 0.0
    %118 = vmatprep.subr.mxu0 0.0
    %119 = vmatpush2.msra.mxu0 0.0
    %120 = vmatprep.subr.mxu0 0.0
    %121 = vmatpush2.msra.mxu0 0.0
    %122 = vmatprep.subr.mxu0 0.0
    %123 = vmatpush2.msra.mxu0 0.0
    %124 = vmatprep.subr.mxu0 0.0
    %125 = vmatpush2.msra.mxu0 0.0
    %126 = vmatprep.subr.mxu0 0.0
    %127 = vmatpush2.msra.mxu0 0.0
    %128 = vmatprep.subr.mxu0 0.0
    %129 = vmatpush2.msra.mxu0 0.0
    %130 = vmatprep.subr.mxu0 0.0
    %131 = vmatpush2.msra.mxu0 0.0
    %132 = vmatprep.subr.mxu0 0.0
    %133 = vmatpush2.msra.mxu0 0.0
    %134 = vmatprep.subr.mxu0 0.0
    %135 = vmatpush2.msra.mxu0 0.0
    %136 = vmatprep.subr.mxu0 0.0
    %137 = vmatpush2.msra.mxu0 0.0
    %138 = vmatprep.subr.mxu0 0.0
    %139 = vmatpush2.msra.mxu0 0.0
    %140 = vmatprep.mubr.f32.mxu0 0.0
    %141 = vmatmul.mubr.f32.gmra.mxu0 %v74
    %v142 = vpop.f32.mrf.mxu0
    %v143 = vadd.f32 %v70, %v142
    %v144 = vpop.f32.mrf.mxu0
    %145 = vdwg.mxu0
    %v146 = vmax.f32 %v143, 0.0
    %v147 = vld [vmem:[#allocation7] sm:$0xff]
    %v148 = vld [vmem:[#allocation7 + $0x8] sm:$0xff]
    %v149 = vld [vmem:[#allocation7 + $0x10] sm:$0xff]
    %v150 = vld [vmem:[#allocation7 + $0x18] sm:$0xff]
    %v151 = vld [vmem:[%s4] sm:$0x1]
    %v153 = vlaneseq
    %v154 = vshrl.u32 %v153, 7
    %v155 = vsub.s32 0, %v154
    %v156 = vrot.slane %v151, %v155
    %v159 = vsel %vm72, %v146, 0
    %161 = vmatprep.subr.mxu0 0.0
    %162 = vmatpush1.msra.mxu0 0.0
    %163 = vmatprep.subr.mxu0 0.0
    %164 = vmatpush1.msra.mxu0 0.0
    %165 = vmatprep.subr.mxu0 0.0
    %166 = vmatpush1.msra.mxu0 0.0
    %167 = vmatprep.subr.mxu0 0.0
    %168 = vmatpush1.msra.mxu0 0.0
    %169 = vmatprep.subr.mxu0 0.0
    %170 = vmatpush1.msra.mxu0 0.0
    %171 = vmatprep.subr.mxu0 0.0
    %172 = vmatpush1.msra.mxu0 0.0
    %173 = vmatprep.subr.mxu0 0.0
    %174 = vmatpush1.msra.mxu0 0.0
    %175 = vmatprep.subr.mxu0 0.0
    %176 = vmatpush1.msra.mxu0 0.0
    %177 = vmatprep.subr.mxu0 0.0
    %178 = vmatpush1.msra.mxu0 0.0
    %179 = vmatprep.subr.mxu0 0.0
    %180 = vmatpush1.msra.mxu0 0.0
    %181 = vmatprep.subr.mxu0 0.0
    %182 = vmatpush1.msra.mxu0 0.0
    %183 = vmatprep.subr.mxu0 0.0
    %184 = vmatpush1.msra.mxu0 0.0
    %185 = vmatprep.subr.mxu0 0.0
    %186 = vmatpush1.msra.mxu0 %v150
    %187 = vmatprep.subr.mxu0 0.0
    %188 = vmatpush1.msra.mxu0 %v149
    %189 = vmatprep.subr.mxu0 0.0
    %190 = vmatpush1.msra.mxu0 %v148
    %191 = vmatprep.subr.mxu0 0.0
    %192 = vmatpush1.msra.mxu0 %v147
    %193 = vmatprep.subr.mxu0 0.0
    %194 = vmatpush2.msra.mxu0 0.0
    %195 = vmatprep.subr.mxu0 0.0
    %196 = vmatpush2.msra.mxu0 0.0
    %197 = vmatprep.subr.mxu0 0.0
    %198 = vmatpush2.msra.mxu0 0.0
    %199 = vmatprep.subr.mxu0 0.0
    %200 = vmatpush2.msra.mxu0 0.0
    %201 = vmatprep.subr.mxu0 0.0
    %202 = vmatpush2.msra.mxu0 0.0
    %203 = vmatprep.subr.mxu0 0.0
    %204 = vmatpush2.msra.mxu0 0.0
    %205 = vmatprep.subr.mxu0 0.0
    %206 = vmatpush2.msra.mxu0 0.0
    %207 = vmatprep.subr.mxu0 0.0
    %208 = vmatpush2.msra.mxu0 0.0
    %209 = vmatprep.subr.mxu0 0.0
    %210 = vmatpush2.msra.mxu0 0.0
    %211 = vmatprep.subr.mxu0 0.0
    %212 = vmatpush2.msra.mxu0 0.0
    %213 = vmatprep.subr.mxu0 0.0
    %214 = vmatpush2.msra.mxu0 0.0
    %215 = vmatprep.subr.mxu0 0.0
    %216 = vmatpush2.msra.mxu0 0.0
    %217 = vmatprep.subr.mxu0 0.0
    %218 = vmatpush2.msra.mxu0 0.0
    %219 = vmatprep.subr.mxu0 0.0
    %220 = vmatpush2.msra.mxu0 0.0
    %221 = vmatprep.subr.mxu0 0.0
    %222 = vmatpush2.msra.mxu0 0.0
    %223 = vmatprep.subr.mxu0 0.0
    %224 = vmatpush2.msra.mxu0 0.0
    %225 = vmatprep.mubr.f32.mxu0 0.0
    %226 = vmatmul.mubr.f32.gmra.mxu0 %v159
    %v227 = vpop.f32.mrf.mxu0
    %v228 = vadd.f32 %v156, %v227
    %v229 = vpop.f32.mrf.mxu0
    %230 = vdwg.mxu0
    %v231 = vmul.f32 %v228, %v228
    %v232 = vsel %vm72, %v231, 0.0
    %233 = vadd.xlane.f32.xlu0 %v232
    %v234 = vpop.xlane.xlu0 %233
    %v235 = vmax.f32 %v234, 1e-24
    %v236 = vrsqrt.pop %v235
    %v237 = vmul.f32 %v228, %v236
    %238 = vst.msk [vmem:[#allocation8] sm:$0xff] %vm72, %v237
    // Predicated region
    $region34: #{trajsimi_regression.1} parent=1 // pred_check
      _
    $region35: #{trajsimi_regression.1} parent=1 // pred_check_branch
      %240 = sbr.rel (0) target = $region37
    $region36: #{trajsimi_regression.1} parent=1 // pred_region
      %s242 = ssub.s32 128, 128
      %243 = vsyncadd [#allocation4], %s242
      %s245 = sshll.u32 [#allocation8], 4
      %s246 = int_to_ptr.vmem [resolvable:$true] %s245
      %248 = dma.vmem_to_hbm [thread:$0]  %s246, 128, %s5, [#allocation4]
    $region37: #{trajsimi_regression.1} parent=1 // pred_fallthru
      _
    // Predicated region
    $region38: #{trajsimi_regression.1} parent=1 // pred_check
      _
    $region39: #{trajsimi_regression.1} parent=1 // pred_check_branch
      %250 = sbr.rel (0) target = $region41
    $region40: #{trajsimi_regression.1} parent=1 // pred_region
      %251 = dma.done [#allocation4], 128
    $region41: #{trajsimi_regression.1} parent=1 // pred_fallthru
      _
    %252 = vsyncpa [#allocation3], 1
    %253 = vsyncpa [#allocation6], 1
    %254 = vsyncpa [#allocation4], 1

</llo_original>
